<compile_context>
chip_gen: v7x
topology: tpu7x:2x2x1
jax: 0.10.0
libtpu: 0.0.40
codegen_flags: <defaults>
</compile_context>

<pallas_src>
import jax
import jax.numpy as jnp
from jax.experimental import pallas as pl
from jax.experimental.pallas import tpu as pltpu


# ------------------------------- kernel -------------------------------------

def time_embedding_kernel(t_ref, theta2_ref, w1_ref, b1_ref, w2_ref, b2_ref,
                          o_ref):
    """One batch tile of the TimeEmbedding forward.

    t_ref      : (TB, 1)  f32   timesteps for this batch tile
    theta2_ref : (1, D)   f32   frequencies duplicated: [theta | theta]
    w1_ref     : (D, H)   bf16  first Linear weight   (resident, 1-buffered)
    b1_ref     : (1, H)   f32
    w2_ref     : (H, D)   bf16  second Linear weight  (resident, 1-buffered)
    b2_ref     : (1, D)   f32
    o_ref      : (TB, D)        output tile
    """
    t = t_ref[...]                                   # (TB, 1) f32
    ang = t * theta2_ref[...]                        # (TB, D) via broadcast

    # Sinusoidal embedding without a lane-axis concat: first half lanes take
    # sin(ang), second half take cos(ang).  Both transcendentals run on the
    # EUP slot; the select is a cheap VPU op.
    half = theta2_ref.shape[-1] // 2
    lane = jax.lax.broadcasted_iota(jnp.int32, ang.shape, 1)
    embd = jnp.where(lane < half, jnp.sin(ang), jnp.cos(ang))   # (TB, D) f32

    # MLP: Linear -> SiLU -> Linear.  bf16 MXU operands, f32 accumulation.
    h = jnp.dot(embd.astype(jnp.bfloat16), w1_ref[...],
                preferred_element_type=jnp.float32) + b1_ref[...]    # (TB, H)
    h = h * jax.nn.sigmoid(h)                                        # SiLU, f32
    out = jnp.dot(h.astype(jnp.bfloat16), w2_ref[...],
                  preferred_element_type=jnp.float32) + b2_ref[...]  # (TB, D)

    o_ref[...] = out.astype(o_ref.dtype)


# ------------------------------- wrapper -------------------------------------

def time_embedding(t, theta, w1, b1, w2, b2, *, block_b=256,
                   out_dtype=jnp.float32):
    """Pallas TimeEmbedding forward.

    t     : (B,) timesteps
    theta : (1, D//2) sinusoidal frequencies
    w1    : (D, H), b1: (1, H), w2: (H, D), b2: (1, D)   (in_features, out_features)
    returns (B, D) in `out_dtype`
    """
    B = t.shape[0]
    D, H = w1.shape
    assert w2.shape == (H, D)
    assert theta.shape == (1, D // 2)
    assert block_b % 8 == 0

    # --- constant / weight prep (pure setup, hoisted out of the kernel) -----
    # Duplicate frequencies across the full embedding width so the kernel
    # needs no lane-axis concat.
    theta2 = jnp.concatenate([theta, theta], axis=-1).astype(jnp.float32)  # (1, D)
    w1b = w1.astype(jnp.bfloat16)          # bf16 MXU operands
    w2b = w2.astype(jnp.bfloat16)
    b1f = b1.astype(jnp.float32)           # biases stay f32
    b2f = b2.astype(jnp.float32)
    t2 = t.reshape(B, 1).astype(jnp.float32)

    # --- batch tile selection -----------------------------------------------
    # Large batches: 256-wide tiles (fills the 256x256 MXU on v6e/v7x, a
    # multiple of v5e's 128).  Modest batches: split into >=2 sublane-aligned
    # tiles so both v7x TensorCores get work.  Tiny batches: a single tile
    # equal to the full batch dim (legal block shape).
    if B > block_b:
        bb = block_b
    elif B >= 16:
        bb = (((B + 1) // 2) + 7) // 8 * 8
    else:
        bb = B
    num_tiles = pl.cdiv(B, bb)

    def resident(shape):
        # Constant-index input: stays in VMEM across all grid steps.
        # Single-buffered -- no point double-buffering a block that never
        # changes, and it halves the weight footprint (key on v7x's 64 MiB).
        nd = len(shape)
        return pl.BlockSpec(shape, lambda i, _nd=nd: (0,) * _nd,
                            pipeline_mode=pl.Buffered(1))

    return pl.pallas_call(
        time_embedding_kernel,
        out_shape=jax.ShapeDtypeStruct((B, D), out_dtype),
        grid=(num_tiles,),
        in_specs=[
            pl.BlockSpec((bb, 1), lambda i: (i, 0)),   # t tile (pipelined)
            resident(theta2.shape),
            resident(w1b.shape),
            resident(b1f.shape),
            resident(w2b.shape),
            resident(b2f.shape),
        ],
        out_specs=pl.BlockSpec((bb, D), lambda i: (i, 0)),
        compiler_params=pltpu.CompilerParams(
            dimension_semantics=("parallel",),
            # Headroom for production-size resident weights; still below
            # v7x's 64 MiB physical VMEM.
            vmem_limit_bytes=48 * 1024 * 1024),
    )(t2, theta2, w1b, b1f, w2b, b2f)


# ---------------------- pure-JAX reference (for checking) --------------------

def time_embedding_ref(t, theta, w1, b1, w2, b2):
    ang = t[:, None] * theta[0][None, :]
    embd = jnp.concatenate([jnp.sin(ang), jnp.cos(ang)], axis=-1)
    h = embd @ w1 + b1
    h = h * jax.nn.sigmoid(h)
    return h @ w2 + b2


# --------------------------------- main ---------------------------------------

if __name__ == "__main__":
    # Shapes consistent with the module: embed_dim=32, hidden_layer_ratio=4
    # -> hidden=128.  Main demo batch=2; a second case exercises multiple
    # (and ragged) batch tiles.
    D, RATIO = 32, 4
    H = RATIO * D
    HALF = D // 2

    key = jax.random.PRNGKey(0)
    ks = jax.random.split(key, 6)

    def rnd(k, shape, scale=0.05):
        return (scale * jax.random.normal(k, shape)).astype(jnp.float32)

    # Sinusoidal frequencies, exactly as in the PyTorch module:
    #   theta = exp(arange(half_dim) / half_dim * -log(100000))
    theta = jnp.exp(
        jnp.arange(HALF, dtype=jnp.float32) / HALF * -jnp.log(100000.0)
    ).reshape(1, HALF)

    # MLP parameters, stored (in_features, out_features) so y = x @ W + b
    # matches PyTorch's x @ W.T + b.
    w1 = rnd(ks[1], (D, H))
    b1 = rnd(ks[2], (1, H))
    w2 = rnd(ks[3], (H, D))
    b2 = rnd(ks[4], (1, D))

    ok = True
    for B, kt in ((2, ks[0]), (300, ks[5])):      # single-tile and multi/ragged-tile
        t = (10.0 * jax.random.uniform(kt, (B,))).astype(jnp.float32)
        out = jax.block_until_ready(time_embedding(t, theta, w1, b1, w2, b2))
        ref = time_embedding_ref(t, theta, w1, b1, w2, b2)
        ok &= out.shape == (B, D)
        # bf16 MXU operands -> loosened tolerance vs. the full-f32 reference.
        ok &= bool(jnp.allclose(out, ref, rtol=2e-2, atol=2e-2))

    assert ok, "mismatch vs JAX reference"
    print("KERNEL_OK")
</pallas_src>

<mosaic_0001>
module attributes {stable_mosaic.version = 11 : i64} {
  func.func @time_embedding_kernel(%arg0: i32, %arg1: memref<2x1xf32, #tpu.memory_space<vmem>>, %arg2: memref<1x32xf32, #tpu.memory_space<vmem>>, %arg3: memref<32x128xbf16, #tpu.memory_space<vmem>>, %arg4: memref<1x128xf32, #tpu.memory_space<vmem>>, %arg5: memref<128x32xbf16, #tpu.memory_space<vmem>>, %arg6: memref<1x32xf32, #tpu.memory_space<vmem>>, %arg7: memref<2x32xf32, #tpu.memory_space<vmem>>) attributes {dimension_semantics = [#tpu.dimension_semantics<parallel>], iteration_bounds = array<i64: 1>, scalar_prefetch = 0 : i64, scratch_operands = 0 : i64, tpu.core_type = #tpu.core_type<tc>, window_params = [{transform_indices = @transform_0, window_bounds = array<i64: 2, 1>}, {pipeline_mode = #tpu.pipeline_mode<synchronous>, transform_indices = @transform_1, window_bounds = array<i64: 1, 32>}, {pipeline_mode = #tpu.pipeline_mode<synchronous>, transform_indices = @transform_2, window_bounds = array<i64: 32, 128>}, {pipeline_mode = #tpu.pipeline_mode<synchronous>, transform_indices = @transform_3, window_bounds = array<i64: 1, 128>}, {pipeline_mode = #tpu.pipeline_mode<synchronous>, transform_indices = @transform_4, window_bounds = array<i64: 128, 32>}, {pipeline_mode = #tpu.pipeline_mode<synchronous>, transform_indices = @transform_5, window_bounds = array<i64: 1, 32>}, {transform_indices = @transform_6, window_bounds = array<i64: 2, 32>}]} {
    %c0 = arith.constant 0 : index
    %c0_0 = arith.constant 0 : index
    %0 = vector.load %arg1[%c0, %c0_0] : memref<2x1xf32, #tpu.memory_space<vmem>>, vector<2x1xf32>
    %c0_1 = arith.constant 0 : index
    %c0_2 = arith.constant 0 : index
    %1 = vector.load %arg2[%c0_1, %c0_2] : memref<1x32xf32, #tpu.memory_space<vmem>>, vector<1x32xf32>
    %2 = vector.broadcast %0 : vector<2x1xf32> to vector<2x32xf32>
    %3 = vector.broadcast %1 : vector<1x32xf32> to vector<2x32xf32>
    %4 = arith.mulf %2, %3 : vector<2x32xf32>
    %5 = tpu.iota {dimensions = array<i32: 1>} : vector<2x32xi32>
    %c16_i32 = arith.constant 16 : i32
    %6 = vector.broadcast %c16_i32 : i32 to vector<2x32xi32>
    %7 = arith.cmpi slt, %5, %6 : vector<2x32xi32>
    %8 = math.sin %4 : vector<2x32xf32>
    %9 = math.cos %4 : vector<2x32xf32>
    %10 = arith.select %7, %8, %9 : vector<2x32xi1>, vector<2x32xf32>
    %11 = arith.truncf %10 : vector<2x32xf32> to vector<2x32xbf16>
    %c0_3 = arith.constant 0 : index
    %c0_4 = arith.constant 0 : index
    %12 = vector.load %arg3[%c0_3, %c0_4] : memref<32x128xbf16, #tpu.memory_space<vmem>>, vector<32x128xbf16>
    %cst = arith.constant dense<0.000000e+00> : vector<2x128xf32>
    %13 = tpu.matmul %11, %12, %cst {dimension_numbers = #tpu.dot_dimension_numbers<[1], [0], [0], [1], [0, 0, 1, 1], [], []>} : vector<2x32xbf16>, vector<32x128xbf16>, vector<2x128xf32> -> vector<2x128xf32>
    %c0_5 = arith.constant 0 : index
    %c0_6 = arith.constant 0 : index
    %14 = vector.load %arg4[%c0_5, %c0_6] : memref<1x128xf32, #tpu.memory_space<vmem>>, vector<1x128xf32>
    %15 = vector.broadcast %14 : vector<1x128xf32> to vector<2x128xf32>
    %16 = arith.addf %13, %15 : vector<2x128xf32>
    %17 = arith.negf %16 : vector<2x128xf32>
    %18 = math.exp %17 : vector<2x128xf32>
    %cst_7 = arith.constant 1.000000e+00 : f32
    %19 = vector.broadcast %cst_7 : f32 to vector<2x128xf32>
    %20 = arith.addf %19, %18 : vector<2x128xf32>
    %21 = arith.divf %19, %20 : vector<2x128xf32>
    %22 = arith.mulf %16, %21 : vector<2x128xf32>
    %23 = arith.truncf %22 : vector<2x128xf32> to vector<2x128xbf16>
    %c0_8 = arith.constant 0 : index
    %c0_9 = arith.constant 0 : index
    %24 = vector.load %arg5[%c0_8, %c0_9] : memref<128x32xbf16, #tpu.memory_space<vmem>>, vector<128x32xbf16>
    %cst_10 = arith.constant dense<0.000000e+00> : vector<2x32xf32>
    %25 = tpu.matmul %23, %24, %cst_10 {dimension_numbers = #tpu.dot_dimension_numbers<[1], [0], [0], [1], [0, 0, 1, 1], [], []>} : vector<2x128xbf16>, vector<128x32xbf16>, vector<2x32xf32> -> vector<2x32xf32>
    %c0_11 = arith.constant 0 : index
    %c0_12 = arith.constant 0 : index
    %26 = vector.load %arg6[%c0_11, %c0_12] : memref<1x32xf32, #tpu.memory_space<vmem>>, vector<1x32xf32>
    %27 = vector.broadcast %26 : vector<1x32xf32> to vector<2x32xf32>
    %28 = arith.addf %25, %27 : vector<2x32xf32>
    %c0_13 = arith.constant 0 : index
    %c0_14 = arith.constant 0 : index
    %29 = vector.load %arg7[%c0_13, %c0_14] : memref<2x32xf32, #tpu.memory_space<vmem>>, vector<2x32xf32>
    tpu.vector_store %arg7[%c0_13, %c0_14], %28 {strides = array<i32>} : memref<2x32xf32, #tpu.memory_space<vmem>>, vector<2x32xf32>,
    return
  }
  func.func @transform_0(%arg0: i32) -> (i32, i32) {
    %c0_i32 = arith.constant 0 : i32
    %c0_i32_0 = arith.constant 0 : i32
    return %arg0, %c0_i32 : i32, i32
  }
  func.func @transform_1(%arg0: i32) -> (i32, i32) {
    %c0_i32 = arith.constant 0 : i32
    %c0_i32_0 = arith.constant 0 : i32
    %c0_i32_1 = arith.constant 0 : i32
    return %c0_i32, %c0_i32_0 : i32, i32
  }
  func.func @transform_2(%arg0: i32) -> (i32, i32) {
    %c0_i32 = arith.constant 0 : i32
    %c0_i32_0 = arith.constant 0 : i32
    %c0_i32_1 = arith.constant 0 : i32
    return %c0_i32, %c0_i32_0 : i32, i32
  }
  func.func @transform_3(%arg0: i32) -> (i32, i32) {
    %c0_i32 = arith.constant 0 : i32
    %c0_i32_0 = arith.constant 0 : i32
    %c0_i32_1 = arith.constant 0 : i32
    return %c0_i32, %c0_i32_0 : i32, i32
  }
  func.func @transform_4(%arg0: i32) -> (i32, i32) {
    %c0_i32 = arith.constant 0 : i32
    %c0_i32_0 = arith.constant 0 : i32
    %c0_i32_1 = arith.constant 0 : i32
    return %c0_i32, %c0_i32_0 : i32, i32
  }
  func.func @transform_5(%arg0: i32) -> (i32, i32) {
    %c0_i32 = arith.constant 0 : i32
    %c0_i32_0 = arith.constant 0 : i32
    %c0_i32_1 = arith.constant 0 : i32
    return %c0_i32, %c0_i32_0 : i32, i32
  }
  func.func @transform_6(%arg0: i32) -> (i32, i32) {
    %c0_i32 = arith.constant 0 : i32
    %c0_i32_0 = arith.constant 0 : i32
    return %arg0, %c0_i32 : i32, i32
  }
}

</mosaic_0001>

<llo_original>
// kernel: tpu_custom_call.1
$region0: #{tpu_custom_call.1}
  #allocation0 [shape = 'u32[]', space=smem, size = 0x4, offset = 0x4, fixed_abs, tag = 'smem constant byte address 0x4 - core index']
  #allocation1 [shape = 'u32[144,128]{1,0:T(1,128)}', space=vmem, size = 0x12000, scoped, tag = 'internal scratch']
  %s0 = inlined_call_operand.vmem [shape: f32[2,1], index: 0, kind: input, shape index: {}]
  %s1 = inlined_call_operand.vmem [shape: f32[1,32], index: 1, kind: input, shape index: {}]
  %s2 = inlined_call_operand.vmem [shape: bf16[32,128], index: 2, kind: input, shape index: {}]
  %s3 = inlined_call_operand.vmem [shape: f32[1,128], index: 3, kind: input, shape index: {}]
  %s4 = inlined_call_operand.vmem [shape: bf16[128,32], index: 4, kind: input, shape index: {}]
  %s5 = inlined_call_operand.vmem [shape: f32[1,32], index: 5, kind: input, shape index: {}]
  %s6 = inlined_call_operand.hbm [shape: f32[2,32], index: 6, kind: output, shape index: {}]
  %s7 = sld [smem:[#allocation0]]
  $region34: #{tpu_custom_call.1} parent=0
    _
  %s9 = ssub.s32 1, %s7
  %s10 = scalar_select 0, %s9, %s7
  $region1: #{tpu_custom_call.1} parent=0
    #allocation2 [shape = 'u8[1024]{0}', space=vmem, size = 0x400, scoped, tag = 'output window, operand 0, single buffered']
    #allocation3 [shape = 's32[1]{0}', space=sflag, size = 0x4, scoped, tag = 'scoped memory for tpu_custom_call.1']
    %11 = vsyncpa [#allocation3], 0
    // Predicated region
    $region2: #{tpu_custom_call.1} parent=1 // pred_check
      _
    $region3: #{tpu_custom_call.1} parent=1 // pred_check_branch
      %13 = sbr.rel (0) target = $region5
    $region4: #{tpu_custom_call.1} parent=1 // pred_region
      _
    $region5: #{tpu_custom_call.1} parent=1 // pred_fallthru
      _
    // Predicated region
    $region6: #{tpu_custom_call.1} parent=1 // pred_check
      _
    $region7: #{tpu_custom_call.1} parent=1 // pred_check_branch
      %15 = sbr.rel (0) target = $region9
    $region8: #{tpu_custom_call.1} parent=1 // pred_region
      _
    $region9: #{tpu_custom_call.1} parent=1 // pred_fallthru
      _
    // Predicated region
    $region10: #{tpu_custom_call.1} parent=1 // pred_check
      _
    $region11: #{tpu_custom_call.1} parent=1 // pred_check_branch
      %17 = sbr.rel (0) target = $region13
    $region12: #{tpu_custom_call.1} parent=1 // pred_region
      _
    $region13: #{tpu_custom_call.1} parent=1 // pred_fallthru
      _
    // Predicated region
    $region14: #{tpu_custom_call.1} parent=1 // pred_check
      _
    $region15: #{tpu_custom_call.1} parent=1 // pred_check_branch
      %19 = sbr.rel (0) target = $region17
    $region16: #{tpu_custom_call.1} parent=1 // pred_region
      _
    $region17: #{tpu_custom_call.1} parent=1 // pred_fallthru
      _
    // Predicated region
    $region18: #{tpu_custom_call.1} parent=1 // pred_check
      _
    $region19: #{tpu_custom_call.1} parent=1 // pred_check_branch
      %21 = sbr.rel (0) target = $region21
    $region20: #{tpu_custom_call.1} parent=1 // pred_region
      _
    $region21: #{tpu_custom_call.1} parent=1 // pred_fallthru
      _
    // Predicated region
    $region22: #{tpu_custom_call.1} parent=1 // pred_check
      _
    $region23: #{tpu_custom_call.1} parent=1 // pred_check_branch
      %23 = sbr.rel (0) target = $region25
    $region24: #{tpu_custom_call.1} parent=1 // pred_region
      _
    $region25: #{tpu_custom_call.1} parent=1 // pred_fallthru
      _
    %v25 = vld [vmem:[%s0] sm:$0x3]
    %v26 = vld [vmem:[%s1] sm:$0x1]
    %28 = vset.pattern.permute.xlu0 0
    %29 = vperm.xlu0 %28, %v25
    %v30 = vpop.permute.xlu0 %29
    %v33 = vlaneseq
    %v34 = vshrl.u32 %v33, 7
    %v35 = vsub.s32 0, %v34
    %v36 = vrot.slane %v26, %v35
    %v38 = vmul.f32 %v30, %v36
    %v39 = vlaneseq
    %v40 = vand.u32 %v39, 127
    %vm41 = vcmp.lt.s32.totalorder %v40, 16
    %v42 = vand.u32 2147483647, %v38
    %vm43 = vcmp.le.f32.partialorder %v42, 0.7853982
    %vm44 = vcmp.lt.s32.totalorder %v38, 0
    %v45 = vand.u32 %v38, 2139095040
    %v46 = vshrl.u32 %v45, 23
    %v47 = vsub.s32 %v46, 127
    %v48 = vand.u32 2147483647, %v38
    %v49 = vand.u32 %v48, 8388607
    %v50 = vor.u32 %v49, 8388608
    %v51 = vsub.s32 0, %v50
    %v52 = vadd.s32 %v47, 1
    %vm53 = vcmp.gt.s32.totalorder %v52, 0
    %v54 = vsel %vm53, %v52, 0
    %v55 = vshrl.u32 %v54, 5
    %v56 = vand.u32 %v54, 31
    %v57 = vsub.s32 32, %v56
    %v58 = vshrl.u32 683565275, %v57
    %v59 = vshll.u32 683565275, %v56
    %v60 = vshrl.u32 2475754826, %v57
    %v61 = vor.u32 %v59, %v60
    %v62 = vshll.u32 2475754826, %v56
    %v63 = vshrl.u32 2131351028, %v57
    %v64 = vor.u32 %v62, %v63
    %v65 = vshll.u32 2131351028, %v56
    %v66 = vshrl.u32 2102212464, %v57
    %v67 = vor.u32 %v65, %v66
    %v68 = vshll.u32 2102212464, %v56
    %v69 = vshrl.u32 920167782, %v57
    %v70 = vor.u32 %v68, %v69
    %v71 = vshll.u32 920167782, %v56
    %v72 = vshrl.u32 1326507024, %v57
    %v73 = vor.u32 %v71, %v72
    %vm74 = vcmp.lt.s32.totalorder %v55, 1
    %vm75 = vcmp.lt.s32.totalorder %v55, 2
    %vm76 = vcmp.lt.s32.totalorder %v55, 3
    %vm77 = vcmp.lt.s32.totalorder %v55, 4
    %v78 = vsel %vm74, %v58, %v61
    %v79 = vsel %vm77, %v67, 2102212464
    %v80 = vsel %vm76, %v64, %v79
    %v81 = vsel %vm75, %v78, %v80
    %v82 = vsel %vm74, %v61, %v64
    %v83 = vsel %vm77, %v70, 920167782
    %v84 = vsel %vm76, %v67, %v83
    %v85 = vsel %vm75, %v82, %v84
    %v86 = vsel %vm74, %v64, %v67
    %v87 = vsel %vm77, %v73, 1326507024
    %v88 = vsel %vm76, %v70, %v87
    %v89 = vsel %vm75, %v86, %v88
    %v90 = vshll.u32 %v50, 8
    %v91 = vmul.u32.u64.compose %v90, %v89
    %v92 = vextract.low.u32 %v91
    %v93 = vextract.high.u32 %v91
    %v94 = vmul.u32.u64.compose %v90, %v85
    %v95 = vextract.low.u32 %v94
    %v96 = vextract.high.u32 %v94
    %v97 = vmul.u32 %v90, %v81
    %v98 = vadd.s32 %v93, %v95
    %vm99 = vc.u32 %v93, %v95
    %v100 = vadd.s32 %v96, 1
    %v101 = vsel %vm99, %v100, %v96
    %v102 = vadd.s32 %v97, %v101
    %v103 = vadd.s32 %v102, 536870912
    %v104 = vshrl.u32 %v103, 30
    %v105 = vshll.u32 %v104, 30
    %v106 = vsub.s32 %v102, %v105
    %vm107 = vcmp.lt.s32.totalorder %v106, 0
    %v108 = vsub.s32 0, %v106
    %v109 = vsel %vm107, %v108, %v106
    %v110 = vclz %v109
    %v111 = vsub.s32 %v110, 2
    %vm112 = vcmp.gt.s32.totalorder 0, %v111
    %v113 = vsel %vm112, 0, %v111
    %v114 = vsub.s32 32, %v113
    %v115 = vshll.u32 %v106, %v113
    %v116 = vshrl.u32 %v98, %v114
    %v117 = vor.u32 %v115, %v116
    %v118 = vsub.s32 4294967266, %v113
    %v119 = vadd.s32 %v118, 127
    %v120 = vshll.u32 %v119, 23
    %v121 = vor.u32 4788187, %v120
    %v122 = vand.u32 2147483647, %v121
    %v124 = vcvt.s32.f32 %v117
    %v125 = vmul.f32 %v124, %v122
    %v126 = vxor.u32 %v125, 2147483648
    %v127 = vsel %vm44, %v126, %v125
    %v128 = vsub.s32 4, %v104
    %v129 = vsel %vm44, %v128, %v104
    %v130 = vsel %vm43, %v38, %v127
    %v131 = vsel %vm43, 0, %v129
    %v132 = vcosq.f32.pop %v130
    %v133 = vsinq.f32.pop %v130
    %vm134 = vweird.f32 %v38
    %v135 = vadd.s32 %v131, 3
    %v136 = vand.u32 %v135, 3
    %vm137 = vcmp.lt.s32.totalorder %v136, 2
    %vm138 = vcmp.eq.s32.totalorder %v136, 0
    %v139 = vxor.u32 %v133, 2147483648
    %v140 = vsel %vm138, %v132, %v139
    %vm141 = vcmp.eq.s32.totalorder %v136, 2
    %v142 = vxor.u32 %v132, 2147483648
    %v143 = vsel %vm141, %v142, %v133
    %v144 = vsel %vm137, %v140, %v143
    %v145 = vsel %vm134, nan, %v144
    %v146 = vand.u32 2147483647, %v38
    %vm147 = vcmp.le.f32.partialorder %v146, 0.7853982
    %vm148 = vcmp.lt.s32.totalorder %v38, 0
    %v149 = vand.u32 %v38, 2139095040
    %v150 = vshrl.u32 %v149, 23
    %v151 = vsub.s32 %v150, 127
    %v152 = vand.u32 2147483647, %v38
    %v153 = vand.u32 %v152, 8388607
    %v154 = vor.u32 %v153, 8388608
    %v155 = vsub.s32 0, %v154
    %v156 = vadd.s32 %v151, 1
    %vm157 = vcmp.gt.s32.totalorder %v156, 0
    %v158 = vsel %vm157, %v156, 0
    %v159 = vshrl.u32 %v158, 5
    %v160 = vand.u32 %v158, 31
    %v161 = vsub.s32 32, %v160
    %v162 = vshrl.u32 683565275, %v161
    %v163 = vshll.u32 683565275, %v160
    %v164 = vshrl.u32 2475754826, %v161
    %v165 = vor.u32 %v163, %v164
    %v166 = vshll.u32 2475754826, %v160
    %v167 = vshrl.u32 2131351028, %v161
    %v168 = vor.u32 %v166, %v167
    %v169 = vshll.u32 2131351028, %v160
    %v170 = vshrl.u32 2102212464, %v161
    %v171 = vor.u32 %v169, %v170
    %v172 = vshll.u32 2102212464, %v160
    %v173 = vshrl.u32 920167782, %v161
    %v174 = vor.u32 %v172, %v173
    %v175 = vshll.u32 920167782, %v160
    %v176 = vshrl.u32 1326507024, %v161
    %v177 = vor.u32 %v175, %v176
    %vm178 = vcmp.lt.s32.totalorder %v159, 1
    %vm179 = vcmp.lt.s32.totalorder %v159, 2
    %vm180 = vcmp.lt.s32.totalorder %v159, 3
    %vm181 = vcmp.lt.s32.totalorder %v159, 4
    %v182 = vsel %vm178, %v162, %v165
    %v183 = vsel %vm181, %v171, 2102212464
    %v184 = vsel %vm180, %v168, %v183
    %v185 = vsel %vm179, %v182, %v184
    %v186 = vsel %vm178, %v165, %v168
    %v187 = vsel %vm181, %v174, 920167782
    %v188 = vsel %vm180, %v171, %v187
    %v189 = vsel %vm179, %v186, %v188
    %v190 = vsel %vm178, %v168, %v171
    %v191 = vsel %vm181, %v177, 1326507024
    %v192 = vsel %vm180, %v174, %v191
    %v193 = vsel %vm179, %v190, %v192
    %v194 = vshll.u32 %v154, 8
    %v195 = vmul.u32.u64.compose %v194, %v193
    %v196 = vextract.low.u32 %v195
    %v197 = vextract.high.u32 %v195
    %v198 = vmul.u32.u64.compose %v194, %v189
    %v199 = vextract.low.u32 %v198
    %v200 = vextract.high.u32 %v198
    %v201 = vmul.u32 %v194, %v185
    %v202 = vadd.s32 %v197, %v199
    %vm203 = vc.u32 %v197, %v199
    %v204 = vadd.s32 %v200, 1
    %v205 = vsel %vm203, %v204, %v200
    %v206 = vadd.s32 %v201, %v205
    %v207 = vadd.s32 %v206, 536870912
    %v208 = vshrl.u32 %v207, 30
    %v209 = vshll.u32 %v208, 30
    %v210 = vsub.s32 %v206, %v209
    %vm211 = vcmp.lt.s32.totalorder %v210, 0
    %v212 = vsub.s32 0, %v210
    %v213 = vsel %vm211, %v212, %v210
    %v214 = vclz %v213
    %v215 = vsub.s32 %v214, 2
    %vm216 = vcmp.gt.s32.totalorder 0, %v215
    %v217 = vsel %vm216, 0, %v215
    %v218 = vsub.s32 32, %v217
    %v219 = vshll.u32 %v210, %v217
    %v220 = vshrl.u32 %v202, %v218
    %v221 = vor.u32 %v219, %v220
    %v222 = vsub.s32 4294967266, %v217
    %v223 = vadd.s32 %v222, 127
    %v224 = vshll.u32 %v223, 23
    %v225 = vor.u32 4788187, %v224
    %v226 = vand.u32 2147483647, %v225
    %v228 = vcvt.s32.f32 %v221
    %v229 = vmul.f32 %v228, %v226
    %v230 = vxor.u32 %v229, 2147483648
    %v231 = vsel %vm148, %v230, %v229
    %v232 = vsub.s32 4, %v208
    %v233 = vsel %vm148, %v232, %v208
    %v234 = vsel %vm147, %v38, %v231
    %v235 = vsel %vm147, 0, %v233
    %v236 = vcosq.f32.pop %v234
    %v237 = vsinq.f32.pop %v234
    %vm238 = vweird.f32 %v38
    %v239 = vand.u32 %v235, 3
    %vm240 = vcmp.lt.s32.totalorder %v239, 2
    %vm241 = vcmp.eq.s32.totalorder %v239, 0
    %v242 = vxor.u32 %v237, 2147483648
    %v243 = vsel %vm241, %v236, %v242
    %vm244 = vcmp.eq.s32.totalorder %v239, 2
    %v245 = vxor.u32 %v236, 2147483648
    %v246 = vsel %vm244, %v245, %v237
    %v247 = vsel %vm240, %v243, %v246
    %v248 = vsel %vm238, nan, %v247
    %v249 = vsel %vm41, %v145, %v248
    %v250 = vpack.c.bf16 %v249, %v249
    %v251 = vld [vmem:[%s2] sm:$0xf]
    %v252 = vld [vmem:[%s2 + $0x4] sm:$0xf]
    %v253 = vld [vmem:[%s2 + $0x8] sm:$0xf]
    %v254 = vld [vmem:[%s2 + $0xc] sm:$0xf]
    %v255 = vld [vmem:[%s3] sm:$0x1]
    %v257 = vlaneseq
    %v258 = vshrl.u32 %v257, 7
    %v259 = vsub.s32 0, %v258
    %v260 = vrot.slane %v255, %v259
    %v266 = vunpack.c.l.b16 %v251
    %v267 = vunpack.c.l.b16 %v252
    %v268 = vunpack.c.l.b16 %v253
    %v269 = vunpack.c.l.b16 %v254
    %v270 = vpack.c.b16 %v267, %v266
    %v271 = vpack.c.b16 %v269, %v268
    %vm274 = vcmask 261120
    %v276 = vsel %vm274, %v250, 0
    %278 = vmatprep.subr.bf16.mxu0 0
    %279 = vmatpush1.bf16.msra.mxu0 %v270
    %280 = vmatprep.subr.bf16.mxu0 0
    %281 = vmatpush1.bf16.msra.mxu0 %v271
    %282 = vmatprep.subr.bf16.mxu0 0
    %283 = vmatpush1.bf16.msra.mxu0 0
    %284 = vmatprep.subr.bf16.mxu0 0
    %285 = vmatpush1.bf16.msra.mxu0 0
    %286 = vmatprep.subr.bf16.mxu0 0
    %287 = vmatpush1.bf16.msra.mxu0 0
    %288 = vmatprep.subr.bf16.mxu0 0
    %289 = vmatpush1.bf16.msra.mxu0 0
    %290 = vmatprep.subr.bf16.mxu0 0
    %291 = vmatpush1.bf16.msra.mxu0 0
    %292 = vmatprep.subr.bf16.mxu0 0
    %293 = vmatpush1.bf16.msra.mxu0 0
    %294 = vmatprep.subr.bf16.mxu0 0
    %295 = vmatpush1.bf16.msra.mxu0 0
    %296 = vmatprep.subr.bf16.mxu0 0
    %297 = vmatpush1.bf16.msra.mxu0 0
    %298 = vmatprep.subr.bf16.mxu0 0
    %299 = vmatpush1.bf16.msra.mxu0 0
    %300 = vmatprep.subr.bf16.mxu0 0
    %301 = vmatpush1.bf16.msra.mxu0 0
    %302 = vmatprep.subr.bf16.mxu0 0
    %303 = vmatpush1.bf16.msra.mxu0 0
    %304 = vmatprep.subr.bf16.mxu0 0
    %305 = vmatpush1.bf16.msra.mxu0 0
    %306 = vmatprep.subr.bf16.mxu0 0
    %307 = vmatpush1.bf16.msra.mxu0 0
    %308 = vmatprep.subr.bf16.mxu0 0
    %309 = vmatpush1.bf16.msra.mxu0 0
    %310 = vmatprep.mubr.bf16.mxu0 0
    %311 = vmatmul.mubr.bf16.gmra.mrb[0].mxu0 %v276
    %v312 = vpop.f32.mrb[0].mxu0
    %v313 = vadd.f32 %v260, %v312
    %v314 = vpop.f32.mrb[0].mxu0
    %v315 = vpop.f32.mrb[0].mxu0
    %v316 = vpop.f32.mrb[0].mxu0
    %317 = vdwg.mxu0
    %v318 = vxor.u32 %v313, 2147483648
    %v319 = vmul.f32 %v318, 1.442695
    %v320 = vpow.pop %v319
    %v321 = vadd.f32 %v320, 1.0
    %v322 = vrcp.pop %v321
    %v323 = vmul.f32 1.0, %v322
    %v324 = vmul.f32 %v313, %v323
    %v325 = vpack.c.bf16 %v324, %v324
    %v326 = vld [vmem:[%s4] sm:$0xf]
    %v327 = vld [vmem:[%s4 + $0x4] sm:$0xf]
    %v328 = vld [vmem:[%s4 + $0x8] sm:$0xf]
    %v329 = vld [vmem:[%s4 + $0xc] sm:$0xf]
    %v330 = vld [vmem:[%s4 + $0x10] sm:$0xf]
    %v331 = vld [vmem:[%s4 + $0x14] sm:$0xf]
    %v332 = vld [vmem:[%s4 + $0x18] sm:$0xf]
    %v333 = vld [vmem:[%s4 + $0x1c] sm:$0xf]
    %v334 = vld [vmem:[%s4 + $0x20] sm:$0xf]
    %v335 = vld [vmem:[%s4 + $0x24] sm:$0xf]
    %v336 = vld [vmem:[%s4 + $0x28] sm:$0xf]
    %v337 = vld [vmem:[%s4 + $0x2c] sm:$0xf]
    %v338 = vld [vmem:[%s4 + $0x30] sm:$0xf]
    %v339 = vld [vmem:[%s4 + $0x34] sm:$0xf]
    %v340 = vld [vmem:[%s4 + $0x38] sm:$0xf]
    %v341 = vld [vmem:[%s4 + $0x3c] sm:$0xf]
    %v342 = vld [vmem:[%s5] sm:$0x1]
    %v344 = vlaneseq
    %v345 = vshrl.u32 %v344, 7
    %v346 = vsub.s32 0, %v345
    %v347 = vrot.slane %v342, %v346
    %v365 = vunpack.c.l.b16 %v326
    %v366 = vunpack.c.l.b16 %v327
    %v367 = vunpack.c.l.b16 %v328
    %v368 = vunpack.c.l.b16 %v329
    %v369 = vunpack.c.l.b16 %v330
    %v370 = vunpack.c.l.b16 %v331
    %v371 = vunpack.c.l.b16 %v332
    %v372 = vunpack.c.l.b16 %v333
    %v373 = vunpack.c.l.b16 %v334
    %v374 = vunpack.c.l.b16 %v335
    %v375 = vunpack.c.l.b16 %v336
    %v376 = vunpack.c.l.b16 %v337
    %v377 = vunpack.c.l.b16 %v338
    %v378 = vunpack.c.l.b16 %v339
    %v379 = vunpack.c.l.b16 %v340
    %v380 = vunpack.c.l.b16 %v341
    %v381 = vpack.c.b16 %v366, %v365
    %v382 = vpack.c.b16 %v368, %v367
    %v383 = vpack.c.b16 %v370, %v369
    %v384 = vpack.c.b16 %v372, %v371
    %v385 = vpack.c.b16 %v374, %v373
    %v386 = vpack.c.b16 %v376, %v375
    %v387 = vpack.c.b16 %v378, %v377
    %v388 = vpack.c.b16 %v380, %v379
    %397 = vmatprep.subr.bf16.mxu0 0
    %398 = vmatpush1.bf16.msra.mxu0 %v381
    %399 = vmatprep.subr.bf16.mxu0 0
    %400 = vmatpush1.bf16.msra.mxu0 %v382
    %401 = vmatprep.subr.bf16.mxu0 0
    %402 = vmatpush1.bf16.msra.mxu0 %v383
    %403 = vmatprep.subr.bf16.mxu0 0
    %404 = vmatpush1.bf16.msra.mxu0 %v384
    %405 = vmatprep.subr.bf16.mxu0 0
    %406 = vmatpush1.bf16.msra.mxu0 %v385
    %407 = vmatprep.subr.bf16.mxu0 0
    %408 = vmatpush1.bf16.msra.mxu0 %v386
    %409 = vmatprep.subr.bf16.mxu0 0
    %410 = vmatpush1.bf16.msra.mxu0 %v387
    %411 = vmatprep.subr.bf16.mxu0 0
    %412 = vmatpush1.bf16.msra.mxu0 %v388
    %413 = vmatprep.subr.bf16.mxu0 0
    %414 = vmatpush1.bf16.msra.mxu0 0
    %415 = vmatprep.subr.bf16.mxu0 0
    %416 = vmatpush1.bf16.msra.mxu0 0
    %417 = vmatprep.subr.bf16.mxu0 0
    %418 = vmatpush1.bf16.msra.mxu0 0
    %419 = vmatprep.subr.bf16.mxu0 0
    %420 = vmatpush1.bf16.msra.mxu0 0
    %421 = vmatprep.subr.bf16.mxu0 0
    %422 = vmatpush1.bf16.msra.mxu0 0
    %423 = vmatprep.subr.bf16.mxu0 0
    %424 = vmatpush1.bf16.msra.mxu0 0
    %425 = vmatprep.subr.bf16.mxu0 0
    %426 = vmatpush1.bf16.msra.mxu0 0
    %427 = vmatprep.subr.bf16.mxu0 0
    %428 = vmatpush1.bf16.msra.mxu0 0
    %429 = vmatprep.mubr.bf16.mxu0 0
    %430 = vmatmul.mubr.bf16.gmra.mrb[0].mxu0 %v325
    %v431 = vpop.f32.mrb[0].mxu0
    %v432 = vadd.f32 %v347, %v431
    %v433 = vpop.f32.mrb[0].mxu0
    %v434 = vpop.f32.mrb[0].mxu0
    %v435 = vpop.f32.mrb[0].mxu0
    %436 = vdwg.mxu0
    %vm437 = vcmask 254976
    %438 = vst.msk [vmem:[#allocation2] sm:$0x3] %vm437, %v432
    // Predicated region
    $region26: #{tpu_custom_call.1} parent=1 // pred_check
      _
    $region27: #{tpu_custom_call.1} parent=1 // pred_check_branch
      %440 = sbr.rel (0) target = $region29
    $region28: #{tpu_custom_call.1} parent=1 // pred_region
      %s442 = ssub.s32 32, 32
      %443 = vsyncadd [#allocation3], %s442
      %s445 = sshll.u32 [#allocation2], 4
      %s446 = int_to_ptr.vmem [resolvable:$true] %s445
      %448 = dma.vmem_to_hbm [thread:$0]  %s446, 32, %s6, [#allocation3]
    $region29: #{tpu_custom_call.1} parent=1 // pred_fallthru
      _
    // Predicated region
    $region30: #{tpu_custom_call.1} parent=1 // pred_check
      _
    $region31: #{tpu_custom_call.1} parent=1 // pred_check_branch
      %450 = sbr.rel (0) target = $region33
    $region32: #{tpu_custom_call.1} parent=1 // pred_region
      %451 = dma.done [#allocation3], 32
    $region33: #{tpu_custom_call.1} parent=1 // pred_fallthru
      _
    %452 = vsyncpa [#allocation3], 1

</llo_original>
